<compile_context>
chip_gen: v7x
topology: tpu7x:2x2x1
jax: 0.10.0
libtpu: 0.0.40
codegen_flags: <defaults>
</compile_context>

<pallas_src>
import functools
from typing import NamedTuple, Tuple

import numpy as np

import jax
import jax.numpy as jnp
from jax import lax
from jax.experimental import pallas as pl
from jax.experimental.pallas import tpu as pltpu


H_IN, W_IN = 21, 3      # spatial size implied by fc1 = Linear(c2 * 21 * 3, l1)
N_OUT = 41              # fc2 = Linear(l1, 41)
LANES = 128             # lane width of the packed small-parameter slab


class GestureMeta(NamedTuple):
    c1: int
    c2: int
    l1: int
    kk: int                    # number of conv taps = ks * 3
    hw: int                    # H_IN * W_IN (flattened spatial)
    pad: int                   # zero-padding of the flattened spatial axis in scratch
    n_out: int
    shifts: Tuple[int, ...]    # flattened source offset per tap (src = dst + shift)
    mask_r0: int               # row offsets inside the packed small slab
    w1_r0: int
    w2_r0: int
    fb_r0: int
    fw2_r0: int


def _round_up8(v):
    return (v + 7) // 8 * 8


def _tap_masks_and_shifts(H, W, kh, kw):
    """'same'-padding taps (PyTorch rule: extra pad on bottom/right for even kernels).

    masks[k, dst] = 1 iff output position dst has an in-bounds source for tap k;
    shifts[k] = flattened source offset, i.e. src = dst + shifts[k] when masked-in.
    """
    pt = (kh - 1) // 2
    pw = (kw - 1) // 2
    kk = kh * kw
    masks = np.zeros((kk, H * W), np.float32)
    shifts = []
    for dh in range(kh):
        for dw in range(kw):
            k = dh * kw + dw
            sh, sw = dh - pt, dw - pw
            shifts.append(sh * W + sw)
            for h in range(H):
                for w in range(W):
                    if 0 <= h + sh < H and 0 <= w + sw < W:
                        masks[k, h * W + w] = 1.0
    return masks, tuple(shifts)


# ----------------------------------------------------------------------------
# One-time parameter preparation (hoisted out of the hot path)
# ----------------------------------------------------------------------------
def prepare_params(params, c1, c2, l1, ks, n_out=N_OUT):
    """Packs every parameter into two slabs:
         wsmall  : (rows, 128) f32  -- tap masks, conv1/conv2 weights+biases,
                                       fc1/fc2 biases, fc2 weight (all row-ranges).
         fw1slab : (63, c2*l1) f32  -- lane-dense fc1 weight, [dst, o*l1 + j].
       Returns (prep_dict, GestureMeta)."""
    w1, b1, w2, b2, fw1, fb1, fw2, fb2 = params
    kh, kw = ks, 3
    kk = kh * kw
    hw = H_IN * W_IN

    masks, shifts = _tap_masks_and_shifts(H_IN, W_IN, kh, kw)
    pad = max(max(abs(s) for s in shifts), 1)

    # sanity: everything must fit in a 128-lane slab
    assert hw <= LANES and kk + 1 <= LANES and c1 * kk + 1 <= LANES
    assert l1 <= LANES and n_out <= LANES
    assert np.asarray(fw1).shape == (l1, c2 * hw)

    mask_r0 = 0
    w1_r0 = _round_up8(kk)
    w2_r0 = w1_r0 + _round_up8(c1)
    fb_r0 = w2_r0 + _round_up8(c2)
    fw2_r0 = fb_r0 + 8
    rows = _round_up8(fw2_r0 + l1)

    ws = np.zeros((rows, LANES), np.float32)
    ws[mask_r0:mask_r0 + kk, 0:hw] = masks
    ws[w1_r0:w1_r0 + c1, 0:kk] = np.asarray(w1, np.float32).reshape(c1, kk)
    ws[w1_r0:w1_r0 + c1, kk:kk + 1] = np.asarray(b1, np.float32).reshape(c1, 1)
    ws[w2_r0:w2_r0 + c2, 0:c1 * kk] = (
        np.asarray(w2, np.float32).transpose(0, 2, 3, 1).reshape(c2, kk * c1))
    ws[w2_r0:w2_r0 + c2, c1 * kk:c1 * kk + 1] = np.asarray(b2, np.float32).reshape(c2, 1)
    ws[fb_r0, 0:l1] = np.asarray(fb1, np.float32)
    ws[fb_r0 + 1, 0:n_out] = np.asarray(fb2, np.float32)
    ws[fw2_r0:fw2_r0 + l1, 0:n_out] = np.asarray(fw2, np.float32).T

    # fc1 weight as a single lane-dense slab: [dst, o*l1 + j] = fw1[j, o*hw + dst]
    fw1slab = (np.asarray(fw1, np.float32).reshape(l1, c2, hw)
               .transpose(2, 1, 0).reshape(hw, c2 * l1))

    meta = GestureMeta(c1=c1, c2=c2, l1=l1, kk=kk, hw=hw, pad=pad, n_out=n_out,
                       shifts=shifts, mask_r0=mask_r0, w1_r0=w1_r0, w2_r0=w2_r0,
                       fb_r0=fb_r0, fw2_r0=fw2_r0)
    prep = {"wsmall": jnp.asarray(ws), "fw1slab": jnp.asarray(fw1slab)}
    return prep, meta


# ----------------------------------------------------------------------------
# Fused Pallas kernel
# ----------------------------------------------------------------------------
def _gesture_fused_kernel(x_ref, ws_ref, fw1_ref, o_ref,
                          xpad_ref, a1pad_ref, xs_ref, a1s_ref, rs_ref, *, meta):
    f32 = jnp.float32
    c1, c2, l1, kk = meta.c1, meta.c2, meta.l1, meta.kk
    hw, pad, n_out = meta.hw, meta.pad, meta.n_out
    shifts = meta.shifts
    mr, w1r, w2r, fbr, fw2r = (meta.mask_r0, meta.w1_r0, meta.w2_r0,
                               meta.fb_r0, meta.fw2_r0)

    # ---- conv1 + relu: in-kernel im2col via zero-padded scratch + boundary masks ----
    xpad_ref[...] = jnp.zeros_like(xpad_ref)
    xpad_ref[:, pad:pad + hw] = x_ref[...]
    for k in range(kk):
        s = shifts[k]
        xs_ref[k:k + 1, :] = (xpad_ref[:, pad + s:pad + s + hw]
                              * ws_ref[mr + k:mr + k + 1, 0:hw])
    w1 = ws_ref[w1r:w1r + c1, 0:kk]                       # (c1, kk)
    b1 = ws_ref[w1r:w1r + c1, kk:kk + 1]                  # (c1, 1)
    a1 = jnp.maximum(
        jnp.dot(w1, xs_ref[...], preferred_element_type=f32) + b1, 0.0)   # (c1, hw)

    # ---- conv2 + relu: single matmul against stacked shifted taps ----
    a1pad_ref[...] = jnp.zeros_like(a1pad_ref)
    a1pad_ref[:, pad:pad + hw] = a1
    for k in range(kk):
        s = shifts[k]
        a1s_ref[k * c1:(k + 1) * c1, :] = (a1pad_ref[:, pad + s:pad + s + hw]
                                           * ws_ref[mr + k:mr + k + 1, 0:hw])
    w2 = ws_ref[w2r:w2r + c2, 0:c1 * kk]                  # (c2, kk*c1)
    b2 = ws_ref[w2r:w2r + c2, c1 * kk:c1 * kk + 1]        # (c2, 1)
    a2 = jnp.maximum(
        jnp.dot(w2, a1s_ref[...], preferred_element_type=f32) + b2, 0.0)  # (c2, hw)

    # ---- flatten (PyTorch channel-major view(-1)) + fc1 + relu ----
    # One lane-dense matmul: rs[o', o*l1 + j] = sum_dst a2[o', dst] * fw1[j, o*hw+dst];
    # the fc1 result is the sum of the diagonal blocks o' == o.
    rs_ref[...] = jnp.dot(a2, fw1_ref[...], preferred_element_type=f32)   # (c2, c2*l1)
    h = ws_ref[fbr:fbr + 1, 0:l1]                          # fc1 bias (1, l1)
    for o in range(c2):
        h = h + rs_ref[o:o + 1, o * l1:(o + 1) * l1]
    h = jnp.maximum(h, 0.0)

    # nn.Dropout(0.5) is identity at inference time.
    # TODO(synk): training-mode dropout (stochastic mask) not implemented.
    # nn.MaxPool2d is defined in __init__ but never used in forward().

    # ---- fc2 ----
    fw2 = ws_ref[fw2r:fw2r + l1, 0:n_out]                  # (l1, n_out)
    fb2 = ws_ref[fbr + 1:fbr + 2, 0:n_out]                 # (1, n_out)
    o_ref[...] = (jnp.dot(h, fw2, preferred_element_type=f32) + fb2).astype(o_ref.dtype)


@functools.partial(jax.jit, static_argnames=("meta",))
def gesture_cnn_forward(x, wsmall, fw1slab, *, meta):
    """x: (1, 1, 21, 3) NCHW.  Returns logits of shape (41,) (matches x.view(-1))."""
    hw, pad, n_out = meta.hw, meta.pad, meta.n_out
    c1, c2, l1, kk = meta.c1, meta.c2, meta.l1, meta.kk
    x_row = x.astype(jnp.float32).reshape(1, hw)           # raw input row; errors if B > 1
    kernel = functools.partial(_gesture_fused_kernel, meta=meta)
    out = pl.pallas_call(
        kernel,
        out_shape=jax.ShapeDtypeStruct((1, n_out), jnp.float32),
        grid=(1,),
        in_specs=[
            pl.BlockSpec((1, hw), lambda i: (0, 0)),
            pl.BlockSpec(wsmall.shape, lambda i: (0, 0)),
            pl.BlockSpec(fw1slab.shape, lambda i: (0, 0)),
        ],
        out_specs=pl.BlockSpec((1, n_out), lambda i: (0, 0)),
        scratch_shapes=[
            pltpu.VMEM((1, hw + 2 * pad), jnp.float32),     # zero-padded input row
            pltpu.VMEM((c1, hw + 2 * pad), jnp.float32),    # zero-padded conv1 activation
            pltpu.VMEM((kk, hw), jnp.float32),              # conv1 shifted taps
            pltpu.VMEM((kk * c1, hw), jnp.float32),         # conv2 shifted taps
            pltpu.VMEM((c2, c2 * l1), jnp.float32),         # fc1 per-channel partials
        ],
        compiler_params=pltpu.CompilerParams(dimension_semantics=("arbitrary",)),
    )(x_row, wsmall, fw1slab)
    return out[0]


# ----------------------------------------------------------------------------
# Pure-JAX reference (lax.conv) for validation
# ----------------------------------------------------------------------------
def reference_forward(x, params, ks):
    w1, b1, w2, b2, fw1, fb1, fw2, fb2 = params
    pt, pb = (ks - 1) // 2, (ks - 1) - (ks - 1) // 2
    pad = ((pt, pb), (1, 1))
    y = lax.conv_general_dilated(x, w1, (1, 1), pad,
                                 dimension_numbers=('NCHW', 'OIHW', 'NCHW'))
    y = jax.nn.relu(y + b1[None, :, None, None])
    y = lax.conv_general_dilated(y, w2, (1, 1), pad,
                                 dimension_numbers=('NCHW', 'OIHW', 'NCHW'))
    y = jax.nn.relu(y + b2[None, :, None, None])
    flat = y.reshape(-1)
    h = jax.nn.relu(flat @ fw1.T + fb1)
    return h @ fw2.T + fb2


if __name__ == "__main__":
    # Small hyperparameters consistent with the module (only ks=3 is validated;
    # even ks would need PyTorch's asymmetric 'same' padding convention re-checked).
    c1, c2, l1, ks = 4, 8, 32, 3

    key = jax.random.PRNGKey(0)
    ks_ = jax.random.split(key, 9)
    params = (
        jax.random.normal(ks_[0], (c1, 1, ks, 3), jnp.float32) * 0.2,          # conv1 w (OIHW)
        jax.random.normal(ks_[1], (c1,), jnp.float32) * 0.1,                   # conv1 b
        jax.random.normal(ks_[2], (c2, c1, ks, 3), jnp.float32) * 0.2,         # conv2 w
        jax.random.normal(ks_[3], (c2,), jnp.float32) * 0.1,                   # conv2 b
        jax.random.normal(ks_[4], (l1, c2 * H_IN * W_IN), jnp.float32) * 0.05,  # fc1 w
        jax.random.normal(ks_[5], (l1,), jnp.float32) * 0.1,                   # fc1 b
        jax.random.normal(ks_[6], (N_OUT, l1), jnp.float32) * 0.05,            # fc2 w
        jax.random.normal(ks_[7], (N_OUT,), jnp.float32) * 0.1,                # fc2 b
    )
    x = jax.random.normal(ks_[8], (1, 1, H_IN, W_IN), jnp.float32)

    # One-time weight prep (outside the hot path).
    prep, meta = prepare_params(params, c1, c2, l1, ks)
    prep = jax.tree_util.tree_map(jax.block_until_ready, prep)

    out = gesture_cnn_forward(x, prep["wsmall"], prep["fw1slab"], meta=meta)
    out = jax.block_until_ready(out)

    ref = jax.block_until_ready(reference_forward(x, params, ks))
    assert out.shape == (N_OUT,), out.shape
    assert jnp.allclose(out, ref, rtol=5e-4, atol=1e-3), (out, ref)
    print("KERNEL_OK")
</pallas_src>

<mosaic_0001>
module attributes {stable_mosaic.version = 11 : i64} {
  func.func @_gesture_fused_kernel(%arg0: i32, %arg1: memref<1x63xf32, #tpu.memory_space<vmem>>, %arg2: memref<72x128xf32, #tpu.memory_space<vmem>>, %arg3: memref<63x256xf32, #tpu.memory_space<vmem>>, %arg4: memref<1x41xf32, #tpu.memory_space<vmem>>, %arg5: memref<1x71xf32, #tpu.memory_space<vmem>>, %arg6: memref<4x71xf32, #tpu.memory_space<vmem>>, %arg7: memref<9x63xf32, #tpu.memory_space<vmem>>, %arg8: memref<36x63xf32, #tpu.memory_space<vmem>>, %arg9: memref<8x256xf32, #tpu.memory_space<vmem>>) attributes {dimension_semantics = [#tpu.dimension_semantics<arbitrary>], iteration_bounds = array<i64: 1>, scalar_prefetch = 0 : i64, scratch_operands = 5 : i64, tpu.core_type = #tpu.core_type<tc>, window_params = [{pipeline_mode = #tpu.pipeline_mode<synchronous>, transform_indices = @transform_0, window_bounds = array<i64: 1, 63>}, {pipeline_mode = #tpu.pipeline_mode<synchronous>, transform_indices = @transform_1, window_bounds = array<i64: 72, 128>}, {pipeline_mode = #tpu.pipeline_mode<synchronous>, transform_indices = @transform_2, window_bounds = array<i64: 63, 256>}, {pipeline_mode = #tpu.pipeline_mode<synchronous>, transform_indices = @transform_3, window_bounds = array<i64: 1, 41>}]} {
    %cst = arith.constant 0.000000e+00 : f32
    %0 = vector.broadcast %cst : f32 to vector<1x71xf32>
    %c0 = arith.constant 0 : index
    %c0_0 = arith.constant 0 : index
    %1 = vector.load %arg5[%c0, %c0_0] : memref<1x71xf32, #tpu.memory_space<vmem>>, vector<1x71xf32>
    tpu.vector_store %arg5[%c0, %c0_0], %0 {strides = array<i32>} : memref<1x71xf32, #tpu.memory_space<vmem>>, vector<1x71xf32>,
    %c0_1 = arith.constant 0 : index
    %c0_2 = arith.constant 0 : index
    %2 = vector.load %arg1[%c0_1, %c0_2] : memref<1x63xf32, #tpu.memory_space<vmem>>, vector<1x63xf32>
    %c0_3 = arith.constant 0 : index
    %c4 = arith.constant 4 : index
    %3 = vector.load %arg5[%c0_3, %c4] : memref<1x71xf32, #tpu.memory_space<vmem>>, vector<1x63xf32>
    tpu.vector_store %arg5[%c0_3, %c4], %2 {strides = array<i32>} : memref<1x71xf32, #tpu.memory_space<vmem>>, vector<1x63xf32>,
    %c0_4 = arith.constant 0 : index
    %c0_5 = arith.constant 0 : index
    %4 = vector.load %arg5[%c0_4, %c0_5] : memref<1x71xf32, #tpu.memory_space<vmem>>, vector<1x63xf32>
    %c0_6 = arith.constant 0 : index
    %c0_7 = arith.constant 0 : index
    %5 = vector.load %arg2[%c0_6, %c0_7] : memref<72x128xf32, #tpu.memory_space<vmem>>, vector<1x63xf32>
    %6 = arith.mulf %4, %5 : vector<1x63xf32>
    %c0_8 = arith.constant 0 : index
    %c0_9 = arith.constant 0 : index
    %7 = vector.load %arg7[%c0_8, %c0_9] : memref<9x63xf32, #tpu.memory_space<vmem>>, vector<1x63xf32>
    tpu.vector_store %arg7[%c0_8, %c0_9], %6 {strides = array<i32>} : memref<9x63xf32, #tpu.memory_space<vmem>>, vector<1x63xf32>,
    %c0_10 = arith.constant 0 : index
    %c1 = arith.constant 1 : index
    %8 = vector.load %arg5[%c0_10, %c1] : memref<1x71xf32, #tpu.memory_space<vmem>>, vector<1x63xf32>
    %c1_11 = arith.constant 1 : index
    %c0_12 = arith.constant 0 : index
    %9 = vector.load %arg2[%c1_11, %c0_12] : memref<72x128xf32, #tpu.memory_space<vmem>>, vector<1x63xf32>
    %10 = arith.mulf %8, %9 : vector<1x63xf32>
    %c1_13 = arith.constant 1 : index
    %c0_14 = arith.constant 0 : index
    %11 = vector.load %arg7[%c1_13, %c0_14] : memref<9x63xf32, #tpu.memory_space<vmem>>, vector<1x63xf32>
    tpu.vector_store %arg7[%c1_13, %c0_14], %10 {strides = array<i32>} : memref<9x63xf32, #tpu.memory_space<vmem>>, vector<1x63xf32>,
    %c0_15 = arith.constant 0 : index
    %c2 = arith.constant 2 : index
    %12 = vector.load %arg5[%c0_15, %c2] : memref<1x71xf32, #tpu.memory_space<vmem>>, vector<1x63xf32>
    %c2_16 = arith.constant 2 : index
    %c0_17 = arith.constant 0 : index
    %13 = vector.load %arg2[%c2_16, %c0_17] : memref<72x128xf32, #tpu.memory_space<vmem>>, vector<1x63xf32>
    %14 = arith.mulf %12, %13 : vector<1x63xf32>
    %c2_18 = arith.constant 2 : index
    %c0_19 = arith.constant 0 : index
    %15 = vector.load %arg7[%c2_18, %c0_19] : memref<9x63xf32, #tpu.memory_space<vmem>>, vector<1x63xf32>
    tpu.vector_store %arg7[%c2_18, %c0_19], %14 {strides = array<i32>} : memref<9x63xf32, #tpu.memory_space<vmem>>, vector<1x63xf32>,
    %c0_20 = arith.constant 0 : index
    %c3 = arith.constant 3 : index
    %16 = vector.load %arg5[%c0_20, %c3] : memref<1x71xf32, #tpu.memory_space<vmem>>, vector<1x63xf32>
    %c3_21 = arith.constant 3 : index
    %c0_22 = arith.constant 0 : index
    %17 = vector.load %arg2[%c3_21, %c0_22] : memref<72x128xf32, #tpu.memory_space<vmem>>, vector<1x63xf32>
    %18 = arith.mulf %16, %17 : vector<1x63xf32>
    %c3_23 = arith.constant 3 : index
    %c0_24 = arith.constant 0 : index
    %19 = vector.load %arg7[%c3_23, %c0_24] : memref<9x63xf32, #tpu.memory_space<vmem>>, vector<1x63xf32>
    tpu.vector_store %arg7[%c3_23, %c0_24], %18 {strides = array<i32>} : memref<9x63xf32, #tpu.memory_space<vmem>>, vector<1x63xf32>,
    %c0_25 = arith.constant 0 : index
    %c4_26 = arith.constant 4 : index
    %20 = vector.load %arg5[%c0_25, %c4_26] : memref<1x71xf32, #tpu.memory_space<vmem>>, vector<1x63xf32>
    %c4_27 = arith.constant 4 : index
    %c0_28 = arith.constant 0 : index
    %21 = vector.load %arg2[%c4_27, %c0_28] : memref<72x128xf32, #tpu.memory_space<vmem>>, vector<1x63xf32>
    %22 = arith.mulf %20, %21 : vector<1x63xf32>
    %c4_29 = arith.constant 4 : index
    %c0_30 = arith.constant 0 : index
    %23 = vector.load %arg7[%c4_29, %c0_30] : memref<9x63xf32, #tpu.memory_space<vmem>>, vector<1x63xf32>
    tpu.vector_store %arg7[%c4_29, %c0_30], %22 {strides = array<i32>} : memref<9x63xf32, #tpu.memory_space<vmem>>, vector<1x63xf32>,
    %c0_31 = arith.constant 0 : index
    %c5 = arith.constant 5 : index
    %24 = vector.load %arg5[%c0_31, %c5] : memref<1x71xf32, #tpu.memory_space<vmem>>, vector<1x63xf32>
    %c5_32 = arith.constant 5 : index
    %c0_33 = arith.constant 0 : index
    %25 = vector.load %arg2[%c5_32, %c0_33] : memref<72x128xf32, #tpu.memory_space<vmem>>, vector<1x63xf32>
    %26 = arith.mulf %24, %25 : vector<1x63xf32>
    %c5_34 = arith.constant 5 : index
    %c0_35 = arith.constant 0 : index
    %27 = vector.load %arg7[%c5_34, %c0_35] : memref<9x63xf32, #tpu.memory_space<vmem>>, vector<1x63xf32>
    tpu.vector_store %arg7[%c5_34, %c0_35], %26 {strides = array<i32>} : memref<9x63xf32, #tpu.memory_space<vmem>>, vector<1x63xf32>,
    %c0_36 = arith.constant 0 : index
    %c6 = arith.constant 6 : index
    %28 = vector.load %arg5[%c0_36, %c6] : memref<1x71xf32, #tpu.memory_space<vmem>>, vector<1x63xf32>
    %c6_37 = arith.constant 6 : index
    %c0_38 = arith.constant 0 : index
    %29 = vector.load %arg2[%c6_37, %c0_38] : memref<72x128xf32, #tpu.memory_space<vmem>>, vector<1x63xf32>
    %30 = arith.mulf %28, %29 : vector<1x63xf32>
    %c6_39 = arith.constant 6 : index
    %c0_40 = arith.constant 0 : index
    %31 = vector.load %arg7[%c6_39, %c0_40] : memref<9x63xf32, #tpu.memory_space<vmem>>, vector<1x63xf32>
    tpu.vector_store %arg7[%c6_39, %c0_40], %30 {strides = array<i32>} : memref<9x63xf32, #tpu.memory_space<vmem>>, vector<1x63xf32>,
    %c0_41 = arith.constant 0 : index
    %c7 = arith.constant 7 : index
    %32 = vector.load %arg5[%c0_41, %c7] : memref<1x71xf32, #tpu.memory_space<vmem>>, vector<1x63xf32>
    %c7_42 = arith.constant 7 : index
    %c0_43 = arith.constant 0 : index
    %33 = vector.load %arg2[%c7_42, %c0_43] : memref<72x128xf32, #tpu.memory_space<vmem>>, vector<1x63xf32>
    %34 = arith.mulf %32, %33 : vector<1x63xf32>
    %c7_44 = arith.constant 7 : index
    %c0_45 = arith.constant 0 : index
    %35 = vector.load %arg7[%c7_44, %c0_45] : memref<9x63xf32, #tpu.memory_space<vmem>>, vector<1x63xf32>
    tpu.vector_store %arg7[%c7_44, %c0_45], %34 {strides = array<i32>} : memref<9x63xf32, #tpu.memory_space<vmem>>, vector<1x63xf32>,
    %c0_46 = arith.constant 0 : index
    %c8 = arith.constant 8 : index
    %36 = vector.load %arg5[%c0_46, %c8] : memref<1x71xf32, #tpu.memory_space<vmem>>, vector<1x63xf32>
    %c8_47 = arith.constant 8 : index
    %c0_48 = arith.constant 0 : index
    %37 = vector.load %arg2[%c8_47, %c0_48] : memref<72x128xf32, #tpu.memory_space<vmem>>, vector<1x63xf32>
    %38 = arith.mulf %36, %37 : vector<1x63xf32>
    %c8_49 = arith.constant 8 : index
    %c0_50 = arith.constant 0 : index
    %39 = vector.load %arg7[%c8_49, %c0_50] : memref<9x63xf32, #tpu.memory_space<vmem>>, vector<1x63xf32>
    tpu.vector_store %arg7[%c8_49, %c0_50], %38 {strides = array<i32>} : memref<9x63xf32, #tpu.memory_space<vmem>>, vector<1x63xf32>,
    %c16 = arith.constant 16 : index
    %c0_51 = arith.constant 0 : index
    %40 = vector.load %arg2[%c16, %c0_51] : memref<72x128xf32, #tpu.memory_space<vmem>>, vector<4x9xf32>
    %c16_52 = arith.constant 16 : index
    %c9 = arith.constant 9 : index
    %41 = vector.load %arg2[%c16_52, %c9] : memref<72x128xf32, #tpu.memory_space<vmem>>, vector<4x1xf32>
    %c0_53 = arith.constant 0 : index
    %c0_54 = arith.constant 0 : index
    %42 = vector.load %arg7[%c0_53, %c0_54] : memref<9x63xf32, #tpu.memory_space<vmem>>, vector<9x63xf32>
    %cst_55 = arith.constant dense<0.000000e+00> : vector<4x63xf32>
    %43 = tpu.matmul %40, %42, %cst_55 {dimension_numbers = #tpu.dot_dimension_numbers<[1], [0], [0], [1], [0, 0, 1, 1], [], []>} : vector<4x9xf32>, vector<9x63xf32>, vector<4x63xf32> -> vector<4x63xf32>
    %44 = vector.broadcast %41 : vector<4x1xf32> to vector<4x63xf32>
    %45 = arith.addf %43, %44 : vector<4x63xf32>
    %cst_56 = arith.constant 0.000000e+00 : f32
    %46 = vector.broadcast %cst_56 : f32 to vector<4x63xf32>
    %47 = arith.maximumf %45, %46 : vector<4x63xf32>
    %cst_57 = arith.constant 0.000000e+00 : f32
    %48 = vector.broadcast %cst_57 : f32 to vector<4x71xf32>
    %c0_58 = arith.constant 0 : index
    %c0_59 = arith.constant 0 : index
    %49 = vector.load %arg6[%c0_58, %c0_59] : memref<4x71xf32, #tpu.memory_space<vmem>>, vector<4x71xf32>
    tpu.vector_store %arg6[%c0_58, %c0_59], %48 {strides = array<i32>} : memref<4x71xf32, #tpu.memory_space<vmem>>, vector<4x71xf32>,
    %c0_60 = arith.constant 0 : index
    %c4_61 = arith.constant 4 : index
    %50 = vector.load %arg6[%c0_60, %c4_61] : memref<4x71xf32, #tpu.memory_space<vmem>>, vector<4x63xf32>
    tpu.vector_store %arg6[%c0_60, %c4_61], %47 {strides = array<i32>} : memref<4x71xf32, #tpu.memory_space<vmem>>, vector<4x63xf32>,
    %c0_62 = arith.constant 0 : index
    %c0_63 = arith.constant 0 : index
    %51 = vector.load %arg6[%c0_62, %c0_63] : memref<4x71xf32, #tpu.memory_space<vmem>>, vector<4x63xf32>
    %c0_64 = arith.constant 0 : index
    %c0_65 = arith.constant 0 : index
    %52 = vector.load %arg2[%c0_64, %c0_65] : memref<72x128xf32, #tpu.memory_space<vmem>>, vector<1x63xf32>
    %53 = vector.broadcast %52 : vector<1x63xf32> to vector<4x63xf32>
    %54 = arith.mulf %51, %53 : vector<4x63xf32>
    %c0_66 = arith.constant 0 : index
    %c0_67 = arith.constant 0 : index
    %55 = vector.load %arg8[%c0_66, %c0_67] : memref<36x63xf32, #tpu.memory_space<vmem>>, vector<4x63xf32>
    tpu.vector_store %arg8[%c0_66, %c0_67], %54 {strides = array<i32>} : memref<36x63xf32, #tpu.memory_space<vmem>>, vector<4x63xf32>,
    %c0_68 = arith.constant 0 : index
    %c1_69 = arith.constant 1 : index
    %56 = vector.load %arg6[%c0_68, %c1_69] : memref<4x71xf32, #tpu.memory_space<vmem>>, vector<4x63xf32>
    %c1_70 = arith.constant 1 : index
    %c0_71 = arith.constant 0 : index
    %57 = vector.load %arg2[%c1_70, %c0_71] : memref<72x128xf32, #tpu.memory_space<vmem>>, vector<1x63xf32>
    %58 = vector.broadcast %57 : vector<1x63xf32> to vector<4x63xf32>
    %59 = arith.mulf %56, %58 : vector<4x63xf32>
    %c4_72 = arith.constant 4 : index
    %c0_73 = arith.constant 0 : index
    %60 = vector.load %arg8[%c4_72, %c0_73] : memref<36x63xf32, #tpu.memory_space<vmem>>, vector<4x63xf32>
    tpu.vector_store %arg8[%c4_72, %c0_73], %59 {strides = array<i32>} : memref<36x63xf32, #tpu.memory_space<vmem>>, vector<4x63xf32>,
    %c0_74 = arith.constant 0 : index
    %c2_75 = arith.constant 2 : index
    %61 = vector.load %arg6[%c0_74, %c2_75] : memref<4x71xf32, #tpu.memory_space<vmem>>, vector<4x63xf32>
    %c2_76 = arith.constant 2 : index
    %c0_77 = arith.constant 0 : index
    %62 = vector.load %arg2[%c2_76, %c0_77] : memref<72x128xf32, #tpu.memory_space<vmem>>, vector<1x63xf32>
    %63 = vector.broadcast %62 : vector<1x63xf32> to vector<4x63xf32>
    %64 = arith.mulf %61, %63 : vector<4x63xf32>
    %c8_78 = arith.constant 8 : index
    %c0_79 = arith.constant 0 : index
    %65 = vector.load %arg8[%c8_78, %c0_79] : memref<36x63xf32, #tpu.memory_space<vmem>>, vector<4x63xf32>
    tpu.vector_store %arg8[%c8_78, %c0_79], %64 {strides = array<i32>} : memref<36x63xf32, #tpu.memory_space<vmem>>, vector<4x63xf32>,
    %c0_80 = arith.constant 0 : index
    %c3_81 = arith.constant 3 : index
    %66 = vector.load %arg6[%c0_80, %c3_81] : memref<4x71xf32, #tpu.memory_space<vmem>>, vector<4x63xf32>
    %c3_82 = arith.constant 3 : index
    %c0_83 = arith.constant 0 : index
    %67 = vector.load %arg2[%c3_82, %c0_83] : memref<72x128xf32, #tpu.memory_space<vmem>>, vector<1x63xf32>
    %68 = vector.broadcast %67 : vector<1x63xf32> to vector<4x63xf32>
    %69 = arith.mulf %66, %68 : vector<4x63xf32>
    %c12 = arith.constant 12 : index
    %c0_84 = arith.constant 0 : index
    %70 = vector.load %arg8[%c12, %c0_84] : memref<36x63xf32, #tpu.memory_space<vmem>>, vector<4x63xf32>
    tpu.vector_store %arg8[%c12, %c0_84], %69 {strides = array<i32>} : memref<36x63xf32, #tpu.memory_space<vmem>>, vector<4x63xf32>,
    %c0_85 = arith.constant 0 : index
    %c4_86 = arith.constant 4 : index
    %71 = vector.load %arg6[%c0_85, %c4_86] : memref<4x71xf32, #tpu.memory_space<vmem>>, vector<4x63xf32>
    %c4_87 = arith.constant 4 : index
    %c0_88 = arith.constant 0 : index
    %72 = vector.load %arg2[%c4_87, %c0_88] : memref<72x128xf32, #tpu.memory_space<vmem>>, vector<1x63xf32>
    %73 = vector.broadcast %72 : vector<1x63xf32> to vector<4x63xf32>
    %74 = arith.mulf %71, %73 : vector<4x63xf32>
    %c16_89 = arith.constant 16 : index
    %c0_90 = arith.constant 0 : index
    %75 = vector.load %arg8[%c16_89, %c0_90] : memref<36x63xf32, #tpu.memory_space<vmem>>, vector<4x63xf32>
    tpu.vector_store %arg8[%c16_89, %c0_90], %74 {strides = array<i32>} : memref<36x63xf32, #tpu.memory_space<vmem>>, vector<4x63xf32>,
    %c0_91 = arith.constant 0 : index
    %c5_92 = arith.constant 5 : index
    %76 = vector.load %arg6[%c0_91, %c5_92] : memref<4x71xf32, #tpu.memory_space<vmem>>, vector<4x63xf32>
    %c5_93 = arith.constant 5 : index
    %c0_94 = arith.constant 0 : index
    %77 = vector.load %arg2[%c5_93, %c0_94] : memref<72x128xf32, #tpu.memory_space<vmem>>, vector<1x63xf32>
    %78 = vector.broadcast %77 : vector<1x63xf32> to vector<4x63xf32>
    %79 = arith.mulf %76, %78 : vector<4x63xf32>
    %c20 = arith.constant 20 : index
    %c0_95 = arith.constant 0 : index
    %80 = vector.load %arg8[%c20, %c0_95] : memref<36x63xf32, #tpu.memory_space<vmem>>, vector<4x63xf32>
    tpu.vector_store %arg8[%c20, %c0_95], %79 {strides = array<i32>} : memref<36x63xf32, #tpu.memory_space<vmem>>, vector<4x63xf32>,
    %c0_96 = arith.constant 0 : index
    %c6_97 = arith.constant 6 : index
    %81 = vector.load %arg6[%c0_96, %c6_97] : memref<4x71xf32, #tpu.memory_space<vmem>>, vector<4x63xf32>
    %c6_98 = arith.constant 6 : index
    %c0_99 = arith.constant 0 : index
    %82 = vector.load %arg2[%c6_98, %c0_99] : memref<72x128xf32, #tpu.memory_space<vmem>>, vector<1x63xf32>
    %83 = vector.broadcast %82 : vector<1x63xf32> to vector<4x63xf32>
    %84 = arith.mulf %81, %83 : vector<4x63xf32>
    %c24 = arith.constant 24 : index
    %c0_100 = arith.constant 0 : index
    %85 = vector.load %arg8[%c24, %c0_100] : memref<36x63xf32, #tpu.memory_space<vmem>>, vector<4x63xf32>
    tpu.vector_store %arg8[%c24, %c0_100], %84 {strides = array<i32>} : memref<36x63xf32, #tpu.memory_space<vmem>>, vector<4x63xf32>,
    %c0_101 = arith.constant 0 : index
    %c7_102 = arith.constant 7 : index
    %86 = vector.load %arg6[%c0_101, %c7_102] : memref<4x71xf32, #tpu.memory_space<vmem>>, vector<4x63xf32>
    %c7_103 = arith.constant 7 : index
    %c0_104 = arith.constant 0 : index
    %87 = vector.load %arg2[%c7_103, %c0_104] : memref<72x128xf32, #tpu.memory_space<vmem>>, vector<1x63xf32>
    %88 = vector.broadcast %87 : vector<1x63xf32> to vector<4x63xf32>
    %89 = arith.mulf %86, %88 : vector<4x63xf32>
    %c28 = arith.constant 28 : index
    %c0_105 = arith.constant 0 : index
    %90 = vector.load %arg8[%c28, %c0_105] : memref<36x63xf32, #tpu.memory_space<vmem>>, vector<4x63xf32>
    tpu.vector_store %arg8[%c28, %c0_105], %89 {strides = array<i32>} : memref<36x63xf32, #tpu.memory_space<vmem>>, vector<4x63xf32>,
    %c0_106 = arith.constant 0 : index
    %c8_107 = arith.constant 8 : index
    %91 = vector.load %arg6[%c0_106, %c8_107] : memref<4x71xf32, #tpu.memory_space<vmem>>, vector<4x63xf32>
    %c8_108 = arith.constant 8 : index
    %c0_109 = arith.constant 0 : index
    %92 = vector.load %arg2[%c8_108, %c0_109] : memref<72x128xf32, #tpu.memory_space<vmem>>, vector<1x63xf32>
    %93 = vector.broadcast %92 : vector<1x63xf32> to vector<4x63xf32>
    %94 = arith.mulf %91, %93 : vector<4x63xf32>
    %c32 = arith.constant 32 : index
    %c0_110 = arith.constant 0 : index
    %95 = vector.load %arg8[%c32, %c0_110] : memref<36x63xf32, #tpu.memory_space<vmem>>, vector<4x63xf32>
    tpu.vector_store %arg8[%c32, %c0_110], %94 {strides = array<i32>} : memref<36x63xf32, #tpu.memory_space<vmem>>, vector<4x63xf32>,
    %c24_111 = arith.constant 24 : index
    %c0_112 = arith.constant 0 : index
    %96 = vector.load %arg2[%c24_111, %c0_112] : memref<72x128xf32, #tpu.memory_space<vmem>>, vector<8x36xf32>
    %c24_113 = arith.constant 24 : index
    %c36 = arith.constant 36 : index
    %97 = vector.load %arg2[%c24_113, %c36] : memref<72x128xf32, #tpu.memory_space<vmem>>, vector<8x1xf32>
    %c0_114 = arith.constant 0 : index
    %c0_115 = arith.constant 0 : index
    %98 = vector.load %arg8[%c0_114, %c0_115] : memref<36x63xf32, #tpu.memory_space<vmem>>, vector<36x63xf32>
    %cst_116 = arith.constant dense<0.000000e+00> : vector<8x63xf32>
    %99 = tpu.matmul %96, %98, %cst_116 {dimension_numbers = #tpu.dot_dimension_numbers<[1], [0], [0], [1], [0, 0, 1, 1], [], []>} : vector<8x36xf32>, vector<36x63xf32>, vector<8x63xf32> -> vector<8x63xf32>
    %100 = vector.broadcast %97 : vector<8x1xf32> to vector<8x63xf32>
    %101 = arith.addf %99, %100 : vector<8x63xf32>
    %cst_117 = arith.constant 0.000000e+00 : f32
    %102 = vector.broadcast %cst_117 : f32 to vector<8x63xf32>
    %103 = arith.maximumf %101, %102 : vector<8x63xf32>
    %c0_118 = arith.constant 0 : index
    %c0_119 = arith.constant 0 : index
    %104 = vector.load %arg3[%c0_118, %c0_119] : memref<63x256xf32, #tpu.memory_space<vmem>>, vector<63x256xf32>
    %cst_120 = arith.constant dense<0.000000e+00> : vector<8x256xf32>
    %105 = tpu.matmul %103, %104, %cst_120 {dimension_numbers = #tpu.dot_dimension_numbers<[1], [0], [0], [1], [0, 0, 1, 1], [], []>} : vector<8x63xf32>, vector<63x256xf32>, vector<8x256xf32> -> vector<8x256xf32>
    %c0_121 = arith.constant 0 : index
    %c0_122 = arith.constant 0 : index
    %106 = vector.load %arg9[%c0_121, %c0_122] : memref<8x256xf32, #tpu.memory_space<vmem>>, vector<8x256xf32>
    tpu.vector_store %arg9[%c0_121, %c0_122], %105 {strides = array<i32>} : memref<8x256xf32, #tpu.memory_space<vmem>>, vector<8x256xf32>,
    %c32_123 = arith.constant 32 : index
    %c0_124 = arith.constant 0 : index
    %107 = vector.load %arg2[%c32_123, %c0_124] : memref<72x128xf32, #tpu.memory_space<vmem>>, vector<1x32xf32>
    %c0_125 = arith.constant 0 : index
    %c0_126 = arith.constant 0 : index
    %108 = vector.load %arg9[%c0_125, %c0_126] : memref<8x256xf32, #tpu.memory_space<vmem>>, vector<1x32xf32>
    %109 = arith.addf %107, %108 : vector<1x32xf32>
    %c1_127 = arith.constant 1 : index
    %c32_128 = arith.constant 32 : index
    %110 = vector.load %arg9[%c1_127, %c32_128] : memref<8x256xf32, #tpu.memory_space<vmem>>, vector<1x32xf32>
    %111 = arith.addf %109, %110 : vector<1x32xf32>
    %c2_129 = arith.constant 2 : index
    %c64 = arith.constant 64 : index
    %112 = vector.load %arg9[%c2_129, %c64] : memref<8x256xf32, #tpu.memory_space<vmem>>, vector<1x32xf32>
    %113 = arith.addf %111, %112 : vector<1x32xf32>
    %c3_130 = arith.constant 3 : index
    %c96 = arith.constant 96 : index
    %114 = vector.load %arg9[%c3_130, %c96] : memref<8x256xf32, #tpu.memory_space<vmem>>, vector<1x32xf32>
    %115 = arith.addf %113, %114 : vector<1x32xf32>
    %c4_131 = arith.constant 4 : index
    %c128 = arith.constant 128 : index
    %116 = vector.load %arg9[%c4_131, %c128] : memref<8x256xf32, #tpu.memory_space<vmem>>, vector<1x32xf32>
    %117 = arith.addf %115, %116 : vector<1x32xf32>
    %c5_132 = arith.constant 5 : index
    %c160 = arith.constant 160 : index
    %118 = vector.load %arg9[%c5_132, %c160] : memref<8x256xf32, #tpu.memory_space<vmem>>, vector<1x32xf32>
    %119 = arith.addf %117, %118 : vector<1x32xf32>
    %c6_133 = arith.constant 6 : index
    %c192 = arith.constant 192 : index
    %120 = vector.load %arg9[%c6_133, %c192] : memref<8x256xf32, #tpu.memory_space<vmem>>, vector<1x32xf32>
    %121 = arith.addf %119, %120 : vector<1x32xf32>
    %c7_134 = arith.constant 7 : index
    %c224 = arith.constant 224 : index
    %122 = vector.load %arg9[%c7_134, %c224] : memref<8x256xf32, #tpu.memory_space<vmem>>, vector<1x32xf32>
    %123 = arith.addf %121, %122 : vector<1x32xf32>
    %cst_135 = arith.constant 0.000000e+00 : f32
    %124 = vector.broadcast %cst_135 : f32 to vector<1x32xf32>
    %125 = arith.maximumf %123, %124 : vector<1x32xf32>
    %c40 = arith.constant 40 : index
    %c0_136 = arith.constant 0 : index
    %126 = vector.load %arg2[%c40, %c0_136] : memref<72x128xf32, #tpu.memory_space<vmem>>, vector<32x41xf32>
    %c33 = arith.constant 33 : index
    %c0_137 = arith.constant 0 : index
    %127 = vector.load %arg2[%c33, %c0_137] : memref<72x128xf32, #tpu.memory_space<vmem>>, vector<1x41xf32>
    %cst_138 = arith.constant dense<0.000000e+00> : vector<1x41xf32>
    %128 = tpu.matmul %125, %126, %cst_138 {dimension_numbers = #tpu.dot_dimension_numbers<[1], [0], [0], [1], [0, 0, 1, 1], [], []>} : vector<1x32xf32>, vector<32x41xf32>, vector<1x41xf32> -> vector<1x41xf32>
    %129 = arith.addf %128, %127 : vector<1x41xf32>
    %c0_139 = arith.constant 0 : index
    %c0_140 = arith.constant 0 : index
    %130 = vector.load %arg4[%c0_139, %c0_140] : memref<1x41xf32, #tpu.memory_space<vmem>>, vector<1x41xf32>
    tpu.vector_store %arg4[%c0_139, %c0_140], %129 {strides = array<i32>} : memref<1x41xf32, #tpu.memory_space<vmem>>, vector<1x41xf32>,
    return
  }
  func.func @transform_0(%arg0: i32) -> (i32, i32) {
    %c0_i32 = arith.constant 0 : i32
    %c0_i32_0 = arith.constant 0 : i32
    %c0_i32_1 = arith.constant 0 : i32
    return %c0_i32, %c0_i32_0 : i32, i32
  }
  func.func @transform_1(%arg0: i32) -> (i32, i32) {
    %c0_i32 = arith.constant 0 : i32
    %c0_i32_0 = arith.constant 0 : i32
    %c0_i32_1 = arith.constant 0 : i32
    return %c0_i32, %c0_i32_0 : i32, i32
  }
  func.func @transform_2(%arg0: i32) -> (i32, i32) {
    %c0_i32 = arith.constant 0 : i32
    %c0_i32_0 = arith.constant 0 : i32
    %c0_i32_1 = arith.constant 0 : i32
    return %c0_i32, %c0_i32_0 : i32, i32
  }
  func.func @transform_3(%arg0: i32) -> (i32, i32) {
    %c0_i32 = arith.constant 0 : i32
    %c0_i32_0 = arith.constant 0 : i32
    %c0_i32_1 = arith.constant 0 : i32
    return %c0_i32, %c0_i32_0 : i32, i32
  }
}

</mosaic_0001>

<llo_original>
// kernel: gesture_cnn_forward.1
$region0: #{gesture_cnn_forward.1}
  #allocation0 [shape = 'u32[]', space=smem, size = 0x4, offset = 0x4, fixed_abs, tag = 'smem constant byte address 0x4 - core index']
  #allocation1 [shape = 'u32[144,128]{1,0:T(1,128)}', space=vmem, size = 0x12000, scoped, tag = 'internal scratch']
  #allocation2 [shape = 'f32[1,71]{1,0:T(1,128)}', space=vmem, size = 0x200, scoped, tag = 'scratch operand']
  #allocation3 [shape = 'f32[4,71]{1,0:T(4,128)}', space=vmem, size = 0x800, scoped, tag = 'scratch operand']
  #allocation4 [shape = 'f32[9,63]{1,0:T(8,128)}', space=vmem, size = 0x2000, scoped, tag = 'scratch operand']
  #allocation5 [shape = 'f32[36,63]{1,0:T(8,128)}', space=vmem, size = 0x5000, scoped, tag = 'scratch operand']
  #allocation6 [shape = 'f32[8,256]{1,0:T(8,128)}', space=vmem, size = 0x2000, scoped, tag = 'scratch operand']
  %s0 = inlined_call_operand.vmem [shape: f32[1,63], index: 0, kind: input, shape index: {}]
  %s1 = inlined_call_operand.hbm [shape: f32[72,128], index: 1, kind: input, shape index: {}]
  %s2 = inlined_call_operand.hbm [shape: f32[63,256], index: 2, kind: input, shape index: {}]
  %s3 = inlined_call_operand.hbm [shape: f32[1,41], index: 3, kind: output, shape index: {}]
  %s4 = sld [smem:[#allocation0]]
  $region30: #{gesture_cnn_forward.1} parent=0
    _
  %s6 = ssub.s32 1, %s4
  %s7 = scalar_select 0, %s6, %s4
  $region1: #{gesture_cnn_forward.1} parent=0
    #allocation7 [shape = 'u8[36864]{0}', space=vmem, size = 0x9000, scoped, tag = 'input window, operand 1, single buffered']
    #allocation8 [shape = 's32[1]{0}', space=sflag, size = 0x4, scoped, tag = 'scoped memory for gesture_cnn_forward.1']
    #allocation9 [shape = 's32[1]{0}', space=sflag, size = 0x4, scoped, tag = 'scoped memory for gesture_cnn_forward.1']
    #allocation10 [shape = 'u8[65536]{0}', space=vmem, size = 0x10000, scoped, tag = 'input window, operand 2, single buffered']
    #allocation11 [shape = 's32[1]{0}', space=sflag, size = 0x4, scoped, tag = 'scoped memory for gesture_cnn_forward.1']
    #allocation12 [shape = 'u8[512]{0}', space=vmem, size = 0x400, scoped, tag = 'output window, operand 0, single buffered']
    %8 = vsyncpa [#allocation8], 0
    %9 = vsyncpa [#allocation11], 0
    %10 = vsyncpa [#allocation9], 0
    // Predicated region
    $region2: #{gesture_cnn_forward.1} parent=1 // pred_check
      _
    $region3: #{gesture_cnn_forward.1} parent=1 // pred_check_branch
      %12 = sbr.rel (0) target = $region5
    $region4: #{gesture_cnn_forward.1} parent=1 // pred_region
      _
    $region5: #{gesture_cnn_forward.1} parent=1 // pred_fallthru
      _
    // Predicated region
    $region6: #{gesture_cnn_forward.1} parent=1 // pred_check
      _
    $region7: #{gesture_cnn_forward.1} parent=1 // pred_check_branch
      %14 = sbr.rel (0) target = $region9
    $region8: #{gesture_cnn_forward.1} parent=1 // pred_region
      %s16 = ssub.s32 1152, 1152
      %17 = vsyncadd [#allocation8], %s16
      %s18 = sshll.u32 [#allocation7], 4
      %s19 = int_to_ptr.vmem [resolvable:$true] %s18
      %24 = dma.hbm_to_vmem [thread:$0]  %s1, 1152, %s19, [#allocation8], 128, 128, 8
    $region9: #{gesture_cnn_forward.1} parent=1 // pred_fallthru
      _
    // Predicated region
    $region10: #{gesture_cnn_forward.1} parent=1 // pred_check
      _
    $region11: #{gesture_cnn_forward.1} parent=1 // pred_check_branch
      %26 = sbr.rel (0) target = $region13
    $region12: #{gesture_cnn_forward.1} parent=1 // pred_region
      %s28 = ssub.s32 2048, 2048
      %29 = vsyncadd [#allocation11], %s28
      %s30 = sshll.u32 [#allocation10], 4
      %s31 = int_to_ptr.vmem [resolvable:$true] %s30
      %36 = dma.hbm_to_vmem [thread:$0]  %s2, 2048, %s31, [#allocation11], 256, 256, 16
    $region13: #{gesture_cnn_forward.1} parent=1 // pred_fallthru
      _
    // Predicated region
    $region14: #{gesture_cnn_forward.1} parent=1 // pred_check
      _
    $region15: #{gesture_cnn_forward.1} parent=1 // pred_check_branch
      %38 = sbr.rel (0) target = $region17
    $region16: #{gesture_cnn_forward.1} parent=1 // pred_region
      %39 = dma.done [#allocation8], 1152
    $region17: #{gesture_cnn_forward.1} parent=1 // pred_fallthru
      _
    // Predicated region
    $region18: #{gesture_cnn_forward.1} parent=1 // pred_check
      _
    $region19: #{gesture_cnn_forward.1} parent=1 // pred_check_branch
      %41 = sbr.rel (0) target = $region21
    $region20: #{gesture_cnn_forward.1} parent=1 // pred_region
      %42 = dma.done [#allocation11], 2048
    $region21: #{gesture_cnn_forward.1} parent=1 // pred_fallthru
      _
    %vm43 = vcmask 573440
    %44 = vst.msk [vmem:[#allocation2] sm:$0x1] %vm43, 0.0
    %v45 = vld [vmem:[%s0] sm:$0x1]
    %v47 = vlaneseq
    %v48 = vshrl.u32 %v47, 7
    %v49 = vsub.s32 0, %v48
    %v50 = vrot.slane %v45, %v49
    %51 = vrot.lane.b32.xlu0 %v50, 4
    %v52 = vpop.permute.xlu0 %51
    %vm54 = vcmask 540704
    %55 = vst.msk [vmem:[#allocation2] sm:$0x1] %vm54, %v52
    %v56 = vld [vmem:[#allocation2] sm:$0x1]
    %v57 = vld [vmem:[#allocation7] sm:$0x1]
    %v58 = vmul.f32 %v56, %v57
    %vm59 = vcmask 507904
    %60 = vst.msk [vmem:[#allocation4] sm:$0x1] %vm59, %v58
    %v61 = vld [vmem:[#allocation2] sm:$0x1]
    %v62 = vld [vmem:[#allocation7 + $0x1] sm:$0x1]
    %v65 = vunpack.c.l.s4 1966171168
    %v66 = vunpack.c.0.s8 %v65
    %v67 = vlaneseq
    %v68 = vshrl.u32 %v67, 7
    %v69 = vsub.s32 %v66, %v68
    %v70 = vrot.slane %v62, %v69
    %v72 = vunpack.c.l.s4 1966171168
    %v73 = vunpack.c.0.s8 %v72
    %v74 = vlaneseq
    %v75 = vshrl.u32 %v74, 7
    %v76 = vsub.s32 %v73, %v75
    %v77 = vrot.slane %v70, %v76
    %78 = vrot.lane.b32.xlu0 %v77, 1
    %v79 = vpop.permute.xlu0 %78
    %v81 = vmul.f32 %v61, %v79
    %v83 = vlaneseq
    %v84 = vshrl.u32 %v83, 7
    %v85 = vsub.s32 0, %v84
    %v86 = vrot.slane %v81, %v85
    %87 = vrot.lane.b32.xlu0 %v86, 127
    %v88 = vpop.permute.xlu0 %87
    %90 = vst.msk [vmem:[#allocation4 + $0x1] sm:$0x1] %vm59, %v88
    %v91 = vld [vmem:[#allocation2] sm:$0x1]
    %v92 = vld [vmem:[#allocation7 + $0x2] sm:$0x1]
    %v95 = vunpack.c.l.s4 1966171168
    %v96 = vunpack.c.0.s8 %v95
    %v97 = vlaneseq
    %v98 = vshrl.u32 %v97, 7
    %v99 = vsub.s32 %v96, %v98
    %v100 = vrot.slane %v92, %v99
    %v102 = vunpack.c.l.s4 1966171168
    %v103 = vunpack.c.0.s8 %v102
    %v104 = vlaneseq
    %v105 = vshrl.u32 %v104, 7
    %v106 = vsub.s32 %v103, %v105
    %v107 = vrot.slane %v100, %v106
    %108 = vrot.lane.b32.xlu0 %v107, 2
    %v109 = vpop.permute.xlu0 %108
    %v111 = vmul.f32 %v91, %v109
    %v113 = vlaneseq
    %v114 = vshrl.u32 %v113, 7
    %v115 = vsub.s32 0, %v114
    %v116 = vrot.slane %v111, %v115
    %117 = vrot.lane.b32.xlu0 %v116, 126
    %v118 = vpop.permute.xlu0 %117
    %120 = vst.msk [vmem:[#allocation4 + $0x2] sm:$0x1] %vm59, %v118
    %v121 = vld [vmem:[#allocation2] sm:$0x1]
    %v122 = vld [vmem:[#allocation7 + $0x3] sm:$0x1]
    %v125 = vunpack.c.l.s4 1966171168
    %v126 = vunpack.c.0.s8 %v125
    %v127 = vlaneseq
    %v128 = vshrl.u32 %v127, 7
    %v129 = vsub.s32 %v126, %v128
    %v130 = vrot.slane %v122, %v129
    %v132 = vunpack.c.l.s4 1966171168
    %v133 = vunpack.c.0.s8 %v132
    %v134 = vlaneseq
    %v135 = vshrl.u32 %v134, 7
    %v136 = vsub.s32 %v133, %v135
    %v137 = vrot.slane %v130, %v136
    %138 = vrot.lane.b32.xlu0 %v137, 3
    %v139 = vpop.permute.xlu0 %138
    %v141 = vmul.f32 %v121, %v139
    %v143 = vlaneseq
    %v144 = vshrl.u32 %v143, 7
    %v145 = vsub.s32 0, %v144
    %v146 = vrot.slane %v141, %v145
    %147 = vrot.lane.b32.xlu0 %v146, 125
    %v148 = vpop.permute.xlu0 %147
    %150 = vst.msk [vmem:[#allocation4 + $0x3] sm:$0x1] %vm59, %v148
    %v151 = vld [vmem:[#allocation2] sm:$0x1]
    %v152 = vld [vmem:[#allocation7 + $0x4] sm:$0x1]
    %v155 = vunpack.c.l.s4 1966171168
    %v156 = vunpack.c.0.s8 %v155
    %v157 = vlaneseq
    %v158 = vshrl.u32 %v157, 7
    %v159 = vsub.s32 %v156, %v158
    %v160 = vrot.slane %v152, %v159
    %v162 = vunpack.c.l.s4 1966171168
    %v163 = vunpack.c.0.s8 %v162
    %v164 = vlaneseq
    %v165 = vshrl.u32 %v164, 7
    %v166 = vsub.s32 %v163, %v165
    %v167 = vrot.slane %v160, %v166
    %168 = vrot.lane.b32.xlu0 %v167, 4
    %v169 = vpop.permute.xlu0 %168
    %v171 = vmul.f32 %v151, %v169
    %v173 = vlaneseq
    %v174 = vshrl.u32 %v173, 7
    %v175 = vsub.s32 0, %v174
    %v176 = vrot.slane %v171, %v175
    %177 = vrot.lane.b32.xlu0 %v176, 124
    %v178 = vpop.permute.xlu0 %177
    %180 = vst.msk [vmem:[#allocation4 + $0x4] sm:$0x1] %vm59, %v178
    %v181 = vld [vmem:[#allocation2] sm:$0x1]
    %v182 = vld [vmem:[#allocation7 + $0x5] sm:$0x1]
    %v185 = vunpack.c.l.s4 1966171168
    %v186 = vunpack.c.0.s8 %v185
    %v187 = vlaneseq
    %v188 = vshrl.u32 %v187, 7
    %v189 = vsub.s32 %v186, %v188
    %v190 = vrot.slane %v182, %v189
    %v192 = vunpack.c.l.s4 1966171168
    %v193 = vunpack.c.0.s8 %v192
    %v194 = vlaneseq
    %v195 = vshrl.u32 %v194, 7
    %v196 = vsub.s32 %v193, %v195
    %v197 = vrot.slane %v190, %v196
    %198 = vrot.lane.b32.xlu0 %v197, 5
    %v199 = vpop.permute.xlu0 %198
    %v201 = vmul.f32 %v181, %v199
    %v203 = vlaneseq
    %v204 = vshrl.u32 %v203, 7
    %v205 = vsub.s32 0, %v204
    %v206 = vrot.slane %v201, %v205
    %207 = vrot.lane.b32.xlu0 %v206, 123
    %v208 = vpop.permute.xlu0 %207
    %210 = vst.msk [vmem:[#allocation4 + $0x5] sm:$0x1] %vm59, %v208
    %v211 = vld [vmem:[#allocation2] sm:$0x1]
    %v212 = vld [vmem:[#allocation7 + $0x6] sm:$0x1]
    %v215 = vunpack.c.l.s4 1966171168
    %v216 = vunpack.c.0.s8 %v215
    %v217 = vlaneseq
    %v218 = vshrl.u32 %v217, 7
    %v219 = vsub.s32 %v216, %v218
    %v220 = vrot.slane %v212, %v219
    %v222 = vunpack.c.l.s4 1966171168
    %v223 = vunpack.c.0.s8 %v222
    %v224 = vlaneseq
    %v225 = vshrl.u32 %v224, 7
    %v226 = vsub.s32 %v223, %v225
    %v227 = vrot.slane %v220, %v226
    %228 = vrot.lane.b32.xlu0 %v227, 6
    %v229 = vpop.permute.xlu0 %228
    %v231 = vmul.f32 %v211, %v229
    %v233 = vlaneseq
    %v234 = vshrl.u32 %v233, 7
    %v235 = vsub.s32 0, %v234
    %v236 = vrot.slane %v231, %v235
    %237 = vrot.lane.b32.xlu0 %v236, 122
    %v238 = vpop.permute.xlu0 %237
    %240 = vst.msk [vmem:[#allocation4 + $0x6] sm:$0x1] %vm59, %v238
    %v241 = vld [vmem:[#allocation2] sm:$0x1]
    %v242 = vld [vmem:[#allocation7 + $0x7] sm:$0x1]
    %v245 = vunpack.c.l.s4 1966171168
    %v246 = vunpack.c.0.s8 %v245
    %v247 = vlaneseq
    %v248 = vshrl.u32 %v247, 7
    %v249 = vsub.s32 %v246, %v248
    %v250 = vrot.slane %v242, %v249
    %v252 = vunpack.c.l.s4 1966171168
    %v253 = vunpack.c.0.s8 %v252
    %v254 = vlaneseq
    %v255 = vshrl.u32 %v254, 7
    %v256 = vsub.s32 %v253, %v255
    %v257 = vrot.slane %v250, %v256
    %258 = vrot.lane.b32.xlu0 %v257, 7
    %v259 = vpop.permute.xlu0 %258
    %v261 = vmul.f32 %v241, %v259
    %v263 = vlaneseq
    %v264 = vshrl.u32 %v263, 7
    %v265 = vsub.s32 0, %v264
    %v266 = vrot.slane %v261, %v265
    %267 = vrot.lane.b32.xlu0 %v266, 121
    %v268 = vpop.permute.xlu0 %267
    %270 = vst.msk [vmem:[#allocation4 + $0x7] sm:$0x1] %vm59, %v268
    %v271 = vld [vmem:[#allocation2] sm:$0x1]
    %v272 = vld [vmem:[#allocation7 + $0x8] sm:$0x1]
    %v275 = vunpack.c.l.s4 1966171168
    %v276 = vunpack.c.0.s8 %v275
    %v277 = vlaneseq
    %v278 = vshrl.u32 %v277, 7
    %v279 = vsub.s32 %v276, %v278
    %v280 = vrot.slane %v272, %v279
    %v282 = vunpack.c.l.s4 1966171168
    %v283 = vunpack.c.0.s8 %v282
    %v284 = vlaneseq
    %v285 = vshrl.u32 %v284, 7
    %v286 = vsub.s32 %v283, %v285
    %v287 = vrot.slane %v280, %v286
    %288 = vrot.lane.b32.xlu0 %v287, 8
    %v289 = vpop.permute.xlu0 %288
    %v291 = vmul.f32 %v271, %v289
    %v293 = vlaneseq
    %v294 = vshrl.u32 %v293, 7
    %v295 = vsub.s32 0, %v294
    %v296 = vrot.slane %v291, %v295
    %297 = vrot.lane.b32.xlu0 %v296, 120
    %v298 = vpop.permute.xlu0 %297
    %300 = vst.msk [vmem:[#allocation4 + $0x8] sm:$0x1] %vm59, %v298
    %v301 = vld [vmem:[#allocation7 + $0x10] sm:$0xf]
    %v302 = vld [vmem:[#allocation4] sm:$0xff]
    %v303 = vld [vmem:[#allocation4 + $0x8] sm:$0x1]
    %305 = vset.pattern.permute.xlu0 9
    %306 = vperm.xlu0 %305, %v301
    %v307 = vpop.permute.xlu0 %306
    %vm309 = vcmask 72704
    %v310 = vsel %vm309, %v301, 0
    %vm312 = vcmask 1040384
    %v314 = vsel %vm312, %v303, 0
    %316 = vmatprep.subr.mxu0 0.0
    %317 = vmatpush1.msra.mxu0 %v302
    %318 = vmatprep.subr.mxu0 0.0
    %319 = vmatpush1.msra.mxu0 %v314
    %320 = vmatprep.subr.mxu0 0.0
    %321 = vmatpush1.msra.mxu0 0.0
    %322 = vmatprep.subr.mxu0 0.0
    %323 = vmatpush1.msra.mxu0 0.0
    %324 = vmatprep.subr.mxu0 0.0
    %325 = vmatpush1.msra.mxu0 0.0
    %326 = vmatprep.subr.mxu0 0.0
    %327 = vmatpush1.msra.mxu0 0.0
    %328 = vmatprep.subr.mxu0 0.0
    %329 = vmatpush1.msra.mxu0 0.0
    %330 = vmatprep.subr.mxu0 0.0
    %331 = vmatpush1.msra.mxu0 0.0
    %332 = vmatprep.subr.mxu0 0.0
    %333 = vmatpush1.msra.mxu0 0.0
    %334 = vmatprep.subr.mxu0 0.0
    %335 = vmatpush1.msra.mxu0 0.0
    %336 = vmatprep.subr.mxu0 0.0
    %337 = vmatpush1.msra.mxu0 0.0
    %338 = vmatprep.subr.mxu0 0.0
    %339 = vmatpush1.msra.mxu0 0.0
    %340 = vmatprep.subr.mxu0 0.0
    %341 = vmatpush1.msra.mxu0 0.0
    %342 = vmatprep.subr.mxu0 0.0
    %343 = vmatpush1.msra.mxu0 0.0
    %344 = vmatprep.subr.mxu0 0.0
    %345 = vmatpush1.msra.mxu0 0.0
    %346 = vmatprep.subr.mxu0 0.0
    %347 = vmatpush1.msra.mxu0 0.0
    %348 = vmatprep.subr.mxu0 0.0
    %349 = vmatpush1.msra.mxu0 0.0
    %350 = vmatprep.subr.mxu0 0.0
    %351 = vmatpush1.msra.mxu0 0.0
    %352 = vmatprep.subr.mxu0 0.0
    %353 = vmatpush1.msra.mxu0 0.0
    %354 = vmatprep.subr.mxu0 0.0
    %355 = vmatpush1.msra.mxu0 0.0
    %356 = vmatprep.subr.mxu0 0.0
    %357 = vmatpush1.msra.mxu0 0.0
    %358 = vmatprep.subr.mxu0 0.0
    %359 = vmatpush1.msra.mxu0 0.0
    %360 = vmatprep.subr.mxu0 0.0
    %361 = vmatpush1.msra.mxu0 0.0
    %362 = vmatprep.subr.mxu0 0.0
    %363 = vmatpush1.msra.mxu0 0.0
    %364 = vmatprep.subr.mxu0 0.0
    %365 = vmatpush1.msra.mxu0 0.0
    %366 = vmatprep.subr.mxu0 0.0
    %367 = vmatpush1.msra.mxu0 0.0
    %368 = vmatprep.subr.mxu0 0.0
    %369 = vmatpush1.msra.mxu0 0.0
    %370 = vmatprep.subr.mxu0 0.0
    %371 = vmatpush1.msra.mxu0 0.0
    %372 = vmatprep.subr.mxu0 0.0
    %373 = vmatpush1.msra.mxu0 0.0
    %374 = vmatprep.subr.mxu0 0.0
    %375 = vmatpush1.msra.mxu0 0.0
    %376 = vmatprep.subr.mxu0 0.0
    %377 = vmatpush1.msra.mxu0 0.0
    %378 = vmatprep.subr.mxu0 0.0
    %379 = vmatpush1.msra.mxu0 0.0
    %380 = vmatprep.mubr.f32.mxu0 0.0
    %381 = vmatmul.mubr.f32.gmra.mrb[0].mxu0 %v310
    %v382 = vpop.f32.mrb[0].mxu0
    %v383 = vadd.f32 %v307, %v382
    %v384 = vpop.f32.mrb[0].mxu0
    %385 = vdwg.mxu0
    %v386 = vmax.f32 %v383, 0.0
    %vm387 = vcmask 576512
    %388 = vst.msk [vmem:[#allocation3] sm:$0xf] %vm387, 0.0
    %390 = vrot.lane.b32.xlu0 %v386, 4
    %v391 = vpop.permute.xlu0 %390
    %vm393 = vcmask 543776
    %394 = vst.msk [vmem:[#allocation3] sm:$0xf] %vm393, %v391
    %v395 = vld [vmem:[#allocation3] sm:$0xf]
    %v396 = vld [vmem:[#allocation7] sm:$0x1]
    %v397 = vlaneseq
    %v398 = vshrl.u32 %v397, 7
    %v399 = vsub.s32 0, %v398
    %v400 = vrot.slane %v396, %v399
    %v401 = vmul.f32 %v395, %v400
    %vm402 = vcmask 510976
    %403 = vst.msk [vmem:[#allocation5] sm:$0xf] %vm402, %v401
    %v404 = vld [vmem:[#allocation3] sm:$0xf]
    %v405 = vld [vmem:[#allocation7 + $0x1] sm:$0x1]
    %v406 = vlaneseq
    %v407 = vshrl.u32 %v406, 7
    %v408 = vsub.s32 0, %v407
    %v409 = vrot.slane %v405, %v408
    %411 = vrot.lane.b32.xlu0 %v409, 1
    %v412 = vpop.permute.xlu0 %411
    %v414 = vmul.f32 %v404, %v412
    %416 = vrot.lane.b32.xlu0 %v414, 127
    %v417 = vpop.permute.xlu0 %416
    %419 = vst.msk [vmem:[#allocation5 + $0x4] sm:$0xf] %vm402, %v417
    %v420 = vld [vmem:[#allocation3] sm:$0xf]
    %v421 = vld [vmem:[#allocation7 + $0x2] sm:$0x1]
    %v422 = vlaneseq
    %v423 = vshrl.u32 %v422, 7
    %v424 = vsub.s32 0, %v423
    %v425 = vrot.slane %v421, %v424
    %427 = vrot.lane.b32.xlu0 %v425, 2
    %v428 = vpop.permute.xlu0 %427
    %v430 = vmul.f32 %v420, %v428
    %432 = vrot.lane.b32.xlu0 %v430, 126
    %v433 = vpop.permute.xlu0 %432
    %435 = vst.msk [vmem:[#allocation5 + $0x8] sm:$0xf] %vm402, %v433
    %v436 = vld [vmem:[#allocation3] sm:$0xf]
    %v437 = vld [vmem:[#allocation7 + $0x3] sm:$0x1]
    %v438 = vlaneseq
    %v439 = vshrl.u32 %v438, 7
    %v440 = vsub.s32 0, %v439
    %v441 = vrot.slane %v437, %v440
    %443 = vrot.lane.b32.xlu0 %v441, 3
    %v444 = vpop.permute.xlu0 %443
    %v446 = vmul.f32 %v436, %v444
    %448 = vrot.lane.b32.xlu0 %v446, 125
    %v449 = vpop.permute.xlu0 %448
    %451 = vst.msk [vmem:[#allocation5 + $0xc] sm:$0xf] %vm402, %v449
    %v452 = vld [vmem:[#allocation3] sm:$0xf]
    %v453 = vld [vmem:[#allocation7 + $0x4] sm:$0x1]
    %v454 = vlaneseq
    %v455 = vshrl.u32 %v454, 7
    %v456 = vsub.s32 0, %v455
    %v457 = vrot.slane %v453, %v456
    %459 = vrot.lane.b32.xlu0 %v457, 4
    %v460 = vpop.permute.xlu0 %459
    %v462 = vmul.f32 %v452, %v460
    %464 = vrot.lane.b32.xlu0 %v462, 124
    %v465 = vpop.permute.xlu0 %464
    %467 = vst.msk [vmem:[#allocation5 + $0x10] sm:$0xf] %vm402, %v465
    %v468 = vld [vmem:[#allocation3] sm:$0xf]
    %v469 = vld [vmem:[#allocation7 + $0x5] sm:$0x1]
    %v470 = vlaneseq
    %v471 = vshrl.u32 %v470, 7
    %v472 = vsub.s32 0, %v471
    %v473 = vrot.slane %v469, %v472
    %475 = vrot.lane.b32.xlu0 %v473, 5
    %v476 = vpop.permute.xlu0 %475
    %v478 = vmul.f32 %v468, %v476
    %480 = vrot.lane.b32.xlu0 %v478, 123
    %v481 = vpop.permute.xlu0 %480
    %483 = vst.msk [vmem:[#allocation5 + $0x14] sm:$0xf] %vm402, %v481
    %v484 = vld [vmem:[#allocation3] sm:$0xf]
    %v485 = vld [vmem:[#allocation7 + $0x6] sm:$0x1]
    %v486 = vlaneseq
    %v487 = vshrl.u32 %v486, 7
    %v488 = vsub.s32 0, %v487
    %v489 = vrot.slane %v485, %v488
    %491 = vrot.lane.b32.xlu0 %v489, 6
    %v492 = vpop.permute.xlu0 %491
    %v494 = vmul.f32 %v484, %v492
    %496 = vrot.lane.b32.xlu0 %v494, 122
    %v497 = vpop.permute.xlu0 %496
    %499 = vst.msk [vmem:[#allocation5 + $0x18] sm:$0xf] %vm402, %v497
    %v500 = vld [vmem:[#allocation3] sm:$0xf]
    %v501 = vld [vmem:[#allocation7 + $0x7] sm:$0x1]
    %v502 = vlaneseq
    %v503 = vshrl.u32 %v502, 7
    %v504 = vsub.s32 0, %v503
    %v505 = vrot.slane %v501, %v504
    %507 = vrot.lane.b32.xlu0 %v505, 7
    %v508 = vpop.permute.xlu0 %507
    %v510 = vmul.f32 %v500, %v508
    %512 = vrot.lane.b32.xlu0 %v510, 121
    %v513 = vpop.permute.xlu0 %512
    %515 = vst.msk [vmem:[#allocation5 + $0x1c] sm:$0xf] %vm402, %v513
    %v516 = vld [vmem:[#allocation3] sm:$0xf]
    %v517 = vld [vmem:[#allocation7 + $0x8] sm:$0x1]
    %v518 = vlaneseq
    %v519 = vshrl.u32 %v518, 7
    %v520 = vsub.s32 0, %v519
    %v521 = vrot.slane %v517, %v520
    %523 = vrot.lane.b32.xlu0 %v521, 8
    %v524 = vpop.permute.xlu0 %523
    %v526 = vmul.f32 %v516, %v524
    %528 = vrot.lane.b32.xlu0 %v526, 120
    %v529 = vpop.permute.xlu0 %528
    %531 = vst.msk [vmem:[#allocation5 + $0x20] sm:$0xf] %vm402, %v529
    %v532 = vld [vmem:[#allocation7 + $0x18] sm:$0xff]
    %v533 = vld [vmem:[#allocation5] sm:$0xff]
    %v534 = vld [vmem:[#allocation5 + $0x8] sm:$0xff]
    %v535 = vld [vmem:[#allocation5 + $0x10] sm:$0xff]
    %v536 = vld [vmem:[#allocation5 + $0x18] sm:$0xff]
    %v537 = vld [vmem:[#allocation5 + $0x20] sm:$0xf]
    %539 = vset.pattern.permute.xlu0 36
    %540 = vperm.xlu0 %539, %v532
    %v541 = vpop.permute.xlu0 %540
    %vm543 = vcmask 293888
    %v544 = vsel %vm543, %v532, 0
    %vm546 = vcmask 1043456
    %v548 = vsel %vm546, %v537, 0
    %550 = vmatprep.subr.mxu0 0.0
    %551 = vmatpush1.msra.mxu0 %v533
    %552 = vmatprep.subr.mxu0 0.0
    %553 = vmatpush1.msra.mxu0 %v534
    %554 = vmatprep.subr.mxu0 0.0
    %555 = vmatpush1.msra.mxu0 %v535
    %556 = vmatprep.subr.mxu0 0.0
    %557 = vmatpush1.msra.mxu0 %v536
    %558 = vmatprep.subr.mxu0 0.0
    %559 = vmatpush1.msra.mxu0 %v548
    %560 = vmatprep.subr.mxu0 0.0
    %561 = vmatpush1.msra.mxu0 0.0
    %562 = vmatprep.subr.mxu0 0.0
    %563 = vmatpush1.msra.mxu0 0.0
    %564 = vmatprep.subr.mxu0 0.0
    %565 = vmatpush1.msra.mxu0 0.0
    %566 = vmatprep.subr.mxu0 0.0
    %567 = vmatpush1.msra.mxu0 0.0
    %568 = vmatprep.subr.mxu0 0.0
    %569 = vmatpush1.msra.mxu0 0.0
    %570 = vmatprep.subr.mxu0 0.0
    %571 = vmatpush1.msra.mxu0 0.0
    %572 = vmatprep.subr.mxu0 0.0
    %573 = vmatpush1.msra.mxu0 0.0
    %574 = vmatprep.subr.mxu0 0.0
    %575 = vmatpush1.msra.mxu0 0.0
    %576 = vmatprep.subr.mxu0 0.0
    %577 = vmatpush1.msra.mxu0 0.0
    %578 = vmatprep.subr.mxu0 0.0
    %579 = vmatpush1.msra.mxu0 0.0
    %580 = vmatprep.subr.mxu0 0.0
    %581 = vmatpush1.msra.mxu0 0.0
    %582 = vmatprep.subr.mxu0 0.0
    %583 = vmatpush1.msra.mxu0 0.0
    %584 = vmatprep.subr.mxu0 0.0
    %585 = vmatpush1.msra.mxu0 0.0
    %586 = vmatprep.subr.mxu0 0.0
    %587 = vmatpush1.msra.mxu0 0.0
    %588 = vmatprep.subr.mxu0 0.0
    %589 = vmatpush1.msra.mxu0 0.0
    %590 = vmatprep.subr.mxu0 0.0
    %591 = vmatpush1.msra.mxu0 0.0
    %592 = vmatprep.subr.mxu0 0.0
    %593 = vmatpush1.msra.mxu0 0.0
    %594 = vmatprep.subr.mxu0 0.0
    %595 = vmatpush1.msra.mxu0 0.0
    %596 = vmatprep.subr.mxu0 0.0
    %597 = vmatpush1.msra.mxu0 0.0
    %598 = vmatprep.subr.mxu0 0.0
    %599 = vmatpush1.msra.mxu0 0.0
    %600 = vmatprep.subr.mxu0 0.0
    %601 = vmatpush1.msra.mxu0 0.0
    %602 = vmatprep.subr.mxu0 0.0
    %603 = vmatpush1.msra.mxu0 0.0
    %604 = vmatprep.subr.mxu0 0.0
    %605 = vmatpush1.msra.mxu0 0.0
    %606 = vmatprep.subr.mxu0 0.0
    %607 = vmatpush1.msra.mxu0 0.0
    %608 = vmatprep.subr.mxu0 0.0
    %609 = vmatpush1.msra.mxu0 0.0
    %610 = vmatprep.subr.mxu0 0.0
    %611 = vmatpush1.msra.mxu0 0.0
    %612 = vmatprep.subr.mxu0 0.0
    %613 = vmatpush1.msra.mxu0 0.0
    %614 = vmatprep.mubr.f32.mxu0 0.0
    %615 = vmatmul.mubr.f32.gmra.mrb[0].mxu0 %v544
    %v616 = vpop.f32.mrb[0].mxu0
    %v617 = vadd.f32 %v541, %v616
    %v618 = vpop.f32.mrb[0].mxu0
    %619 = vdwg.mxu0
    %v620 = vmax.f32 %v617, 0.0
    %v621 = vld [vmem:[#allocation10] sm:$0xff]
    %v622 = vld [vmem:[#allocation10 + $0x8] sm:$0xff]
    %v623 = vld [vmem:[#allocation10 + $0x10] sm:$0xff]
    %v624 = vld [vmem:[#allocation10 + $0x18] sm:$0xff]
    %v625 = vld [vmem:[#allocation10 + $0x20] sm:$0xff]
    %v626 = vld [vmem:[#allocation10 + $0x28] sm:$0xff]
    %v627 = vld [vmem:[#allocation10 + $0x30] sm:$0xff]
    %v628 = vld [vmem:[#allocation10 + $0x38] sm:$0xff]
    %v629 = vld [vmem:[#allocation10 + $0x40] sm:$0xff]
    %v630 = vld [vmem:[#allocation10 + $0x48] sm:$0xff]
    %v631 = vld [vmem:[#allocation10 + $0x50] sm:$0xff]
    %v632 = vld [vmem:[#allocation10 + $0x58] sm:$0xff]
    %v633 = vld [vmem:[#allocation10 + $0x60] sm:$0xff]
    %v634 = vld [vmem:[#allocation10 + $0x68] sm:$0xff]
    %v635 = vld [vmem:[#allocation10 + $0x70] sm:$0x7f]
    %v636 = vld [vmem:[#allocation10 + $0x78] sm:$0x7f]
    %vm637 = vcmask 515072
    %v639 = vsel %vm637, %v620, 0
    %vm641 = vcmask 1046528
    %v643 = vsel %vm641, %v635, 0
    %v646 = vsel %vm641, %v636, 0
    %648 = vmatprep.subr.mxu0 %v622
    %649 = vmatpush1.msra.mxu0 %v621
    %650 = vmatprep.subr.mxu0 %v624
    %651 = vmatpush1.msra.mxu0 %v623
    %652 = vmatprep.subr.mxu0 %v626
    %653 = vmatpush1.msra.mxu0 %v625
    %654 = vmatprep.subr.mxu0 %v628
    %655 = vmatpush1.msra.mxu0 %v627
    %656 = vmatprep.subr.mxu0 %v630
    %657 = vmatpush1.msra.mxu0 %v629
    %658 = vmatprep.subr.mxu0 %v632
    %659 = vmatpush1.msra.mxu0 %v631
    %660 = vmatprep.subr.mxu0 %v634
    %661 = vmatpush1.msra.mxu0 %v633
    %662 = vmatprep.subr.mxu0 %v646
    %663 = vmatpush1.msra.mxu0 %v643
    %664 = vmatprep.subr.mxu0 0.0
    %665 = vmatpush1.msra.mxu0 0.0
    %666 = vmatprep.subr.mxu0 0.0
    %667 = vmatpush1.msra.mxu0 0.0
    %668 = vmatprep.subr.mxu0 0.0
    %669 = vmatpush1.msra.mxu0 0.0
    %670 = vmatprep.subr.mxu0 0.0
    %671 = vmatpush1.msra.mxu0 0.0
    %672 = vmatprep.subr.mxu0 0.0
    %673 = vmatpush1.msra.mxu0 0.0
    %674 = vmatprep.subr.mxu0 0.0
    %675 = vmatpush1.msra.mxu0 0.0
    %676 = vmatprep.subr.mxu0 0.0
    %677 = vmatpush1.msra.mxu0 0.0
    %678 = vmatprep.subr.mxu0 0.0
    %679 = vmatpush1.msra.mxu0 0.0
    %680 = vmatprep.subr.mxu0 0.0
    %681 = vmatpush1.msra.mxu0 0.0
    %682 = vmatprep.subr.mxu0 0.0
    %683 = vmatpush1.msra.mxu0 0.0
    %684 = vmatprep.subr.mxu0 0.0
    %685 = vmatpush1.msra.mxu0 0.0
    %686 = vmatprep.subr.mxu0 0.0
    %687 = vmatpush1.msra.mxu0 0.0
    %688 = vmatprep.subr.mxu0 0.0
    %689 = vmatpush1.msra.mxu0 0.0
    %690 = vmatprep.subr.mxu0 0.0
    %691 = vmatpush1.msra.mxu0 0.0
    %692 = vmatprep.subr.mxu0 0.0
    %693 = vmatpush1.msra.mxu0 0.0
    %694 = vmatprep.subr.mxu0 0.0
    %695 = vmatpush1.msra.mxu0 0.0
    %696 = vmatprep.subr.mxu0 0.0
    %697 = vmatpush1.msra.mxu0 0.0
    %698 = vmatprep.subr.mxu0 0.0
    %699 = vmatpush1.msra.mxu0 0.0
    %700 = vmatprep.subr.mxu0 0.0
    %701 = vmatpush1.msra.mxu0 0.0
    %702 = vmatprep.subr.mxu0 0.0
    %703 = vmatpush1.msra.mxu0 0.0
    %704 = vmatprep.subr.mxu0 0.0
    %705 = vmatpush1.msra.mxu0 0.0
    %706 = vmatprep.subr.mxu0 0.0
    %707 = vmatpush1.msra.mxu0 0.0
    %708 = vmatprep.subr.mxu0 0.0
    %709 = vmatpush1.msra.mxu0 0.0
    %710 = vmatprep.subr.mxu0 0.0
    %711 = vmatpush1.msra.mxu0 0.0
    %712 = vmatprep.mubr.f32.mxu0 0.0
    %713 = vmatmul.mubr.f32.gmra.mrb[0].mxu0 %v639
    %v714 = vpop.f32.mrb[0].mxu0
    %v715 = vadd.f32 0.0, %v714
    %v716 = vpop.f32.mrb[0].mxu0
    %v717 = vadd.f32 0.0, %v716
    %718 = vdwg.mxu0
    %719 = vst [vmem:[#allocation6] sm:$0xff] %v715
    %720 = vst [vmem:[#allocation6 + $0x8] sm:$0xff] %v717
    %v721 = vld [vmem:[#allocation7 + $0x20] sm:$0x1]
    %v722 = vld [vmem:[#allocation6] ss:$0 sm:$0xff]
    %v723 = vadd.f32 %v721, %v722
    %v724 = vld [vmem:[#allocation6 + $0x1] ss:$0 sm:$0xff]
    %726 = vrot.lane.b32.xlu0 %v724, 96
    %v727 = vpop.permute.xlu0 %726
    %v729 = vadd.f32 %v723, %v727
    %v730 = vld [vmem:[#allocation6 + $0x2] ss:$0 sm:$0xff]
    %732 = vrot.lane.b32.xlu0 %v730, 64
    %v733 = vpop.permute.xlu0 %732
    %v735 = vadd.f32 %v729, %v733
    %v736 = vld [vmem:[#allocation6 + $0x3] ss:$0 sm:$0xff]
    %738 = vrot.lane.b32.xlu0 %v736, 32
    %v739 = vpop.permute.xlu0 %738
    %v741 = vadd.f32 %v735, %v739
    %v742 = vld [vmem:[#allocation6 + $0xc] ss:$0 sm:$0xff]
    %v743 = vadd.f32 %v741, %v742
    %v744 = vld [vmem:[#allocation6 + $0xd] ss:$0 sm:$0xff]
    %746 = vrot.lane.b32.xlu0 %v744, 96
    %v747 = vpop.permute.xlu0 %746
    %v749 = vadd.f32 %v743, %v747
    %v750 = vld [vmem:[#allocation6 + $0xe] ss:$0 sm:$0xff]
    %752 = vrot.lane.b32.xlu0 %v750, 64
    %v753 = vpop.permute.xlu0 %752
    %v755 = vadd.f32 %v749, %v753
    %v756 = vld [vmem:[#allocation6 + $0xf] ss:$0 sm:$0xff]
    %758 = vrot.lane.b32.xlu0 %v756, 32
    %v759 = vpop.permute.xlu0 %758
    %v761 = vadd.f32 %v755, %v759
    %v762 = vmax.f32 %v761, 0.0
    %v763 = vld [vmem:[#allocation7 + $0x28] sm:$0xff]
    %v764 = vld [vmem:[#allocation7 + $0x30] sm:$0xff]
    %v765 = vld [vmem:[#allocation7 + $0x38] sm:$0xff]
    %v766 = vld [vmem:[#allocation7 + $0x40] sm:$0xff]
    %v767 = vld [vmem:[#allocation7 + $0x21] sm:$0x1]
    %vm768 = vcmask 261120
    %v770 = vsel %vm768, %v762, 0
    %772 = vmatprep.subr.mxu0 0.0
    %773 = vmatpush1.msra.mxu0 %v763
    %774 = vmatprep.subr.mxu0 0.0
    %775 = vmatpush1.msra.mxu0 %v764
    %776 = vmatprep.subr.mxu0 0.0
    %777 = vmatpush1.msra.mxu0 %v765
    %778 = vmatprep.subr.mxu0 0.0
    %779 = vmatpush1.msra.mxu0 %v766
    %780 = vmatprep.subr.mxu0 0.0
    %781 = vmatpush1.msra.mxu0 0.0
    %782 = vmatprep.subr.mxu0 0.0
    %783 = vmatpush1.msra.mxu0 0.0
    %784 = vmatprep.subr.mxu0 0.0
    %785 = vmatpush1.msra.mxu0 0.0
    %786 = vmatprep.subr.mxu0 0.0
    %787 = vmatpush1.msra.mxu0 0.0
    %788 = vmatprep.subr.mxu0 0.0
    %789 = vmatpush1.msra.mxu0 0.0
    %790 = vmatprep.subr.mxu0 0.0
    %791 = vmatpush1.msra.mxu0 0.0
    %792 = vmatprep.subr.mxu0 0.0
    %793 = vmatpush1.msra.mxu0 0.0
    %794 = vmatprep.subr.mxu0 0.0
    %795 = vmatpush1.msra.mxu0 0.0
    %796 = vmatprep.subr.mxu0 0.0
    %797 = vmatpush1.msra.mxu0 0.0
    %798 = vmatprep.subr.mxu0 0.0
    %799 = vmatpush1.msra.mxu0 0.0
    %800 = vmatprep.subr.mxu0 0.0
    %801 = vmatpush1.msra.mxu0 0.0
    %802 = vmatprep.subr.mxu0 0.0
    %803 = vmatpush1.msra.mxu0 0.0
    %804 = vmatprep.subr.mxu0 0.0
    %805 = vmatpush1.msra.mxu0 0.0
    %806 = vmatprep.subr.mxu0 0.0
    %807 = vmatpush1.msra.mxu0 0.0
    %808 = vmatprep.subr.mxu0 0.0
    %809 = vmatpush1.msra.mxu0 0.0
    %810 = vmatprep.subr.mxu0 0.0
    %811 = vmatpush1.msra.mxu0 0.0
    %812 = vmatprep.subr.mxu0 0.0
    %813 = vmatpush1.msra.mxu0 0.0
    %814 = vmatprep.subr.mxu0 0.0
    %815 = vmatpush1.msra.mxu0 0.0
    %816 = vmatprep.subr.mxu0 0.0
    %817 = vmatpush1.msra.mxu0 0.0
    %818 = vmatprep.subr.mxu0 0.0
    %819 = vmatpush1.msra.mxu0 0.0
    %820 = vmatprep.subr.mxu0 0.0
    %821 = vmatpush1.msra.mxu0 0.0
    %822 = vmatprep.subr.mxu0 0.0
    %823 = vmatpush1.msra.mxu0 0.0
    %824 = vmatprep.subr.mxu0 0.0
    %825 = vmatpush1.msra.mxu0 0.0
    %826 = vmatprep.subr.mxu0 0.0
    %827 = vmatpush1.msra.mxu0 0.0
    %828 = vmatprep.subr.mxu0 0.0
    %829 = vmatpush1.msra.mxu0 0.0
    %830 = vmatprep.subr.mxu0 0.0
    %831 = vmatpush1.msra.mxu0 0.0
    %832 = vmatprep.subr.mxu0 0.0
    %833 = vmatpush1.msra.mxu0 0.0
    %834 = vmatprep.subr.mxu0 0.0
    %835 = vmatpush1.msra.mxu0 0.0
    %836 = vmatprep.mubr.f32.mxu0 0.0
    %837 = vmatmul.mubr.f32.gmra.mrb[0].mxu0 %v770
    %v838 = vpop.f32.mrb[0].mxu0
    %v839 = vadd.f32 %v767, %v838
    %v840 = vpop.f32.mrb[0].mxu0
    %841 = vdwg.mxu0
    %vm842 = vcmask 327680
    %843 = vst.msk [vmem:[#allocation12] sm:$0x1] %vm842, %v839
    // Predicated region
    $region22: #{gesture_cnn_forward.1} parent=1 // pred_check
      _
    $region23: #{gesture_cnn_forward.1} parent=1 // pred_check_branch
      %845 = sbr.rel (0) target = $region25
    $region24: #{gesture_cnn_forward.1} parent=1 // pred_region
      %s847 = ssub.s32 16, 16
      %848 = vsyncadd [#allocation9], %s847
      %s850 = sshll.u32 [#allocation12], 4
      %s851 = int_to_ptr.vmem [resolvable:$true] %s850
      %853 = dma.vmem_to_hbm [thread:$0]  %s851, 16, %s3, [#allocation9]
    $region25: #{gesture_cnn_forward.1} parent=1 // pred_fallthru
      _
    // Predicated region
    $region26: #{gesture_cnn_forward.1} parent=1 // pred_check
      _
    $region27: #{gesture_cnn_forward.1} parent=1 // pred_check_branch
      %855 = sbr.rel (0) target = $region29
    $region28: #{gesture_cnn_forward.1} parent=1 // pred_region
      %856 = dma.done [#allocation9], 16
    $region29: #{gesture_cnn_forward.1} parent=1 // pred_fallthru
      _
    %857 = vsyncpa [#allocation8], 1
    %858 = vsyncpa [#allocation11], 1
    %859 = vsyncpa [#allocation9], 1

</llo_original>
